<compile_context>
chip_gen: v5e
topology: v5e:2x2
jax: 0.10.0
libtpu: 0.0.40
codegen_flags: <defaults>
</compile_context>

<pallas_src>
import jax
import jax.numpy as jnp
from jax import lax
from jax.experimental import pallas as pl
from jax.experimental.pallas import tpu as pltpu


def _make_conv_stats_kernel(C, NB, TR, rows):
    """Pass 1: 1x1 conv (channel FMAs) + per-batch-block sum / sum-of-squares."""
    needs_mask = (rows % TR) != 0
    R = NB * TR  # flattened rows per step

    def kernel(w_ref, x_ref, v1_ref, sum_ref, sq_ref):
        # w_ref  : SMEM (C,) f32
        # x_ref  : VMEM (NB, C, TR, 128) f32
        # v1_ref : VMEM (NB, TR, 128) f32
        # sum_ref, sq_ref : VMEM (8, 128) f32 accumulators, resident across j.
        j = pl.program_id(1)

        @pl.when(j == 0)
        def _init():
            sum_ref[...] = jnp.zeros_like(sum_ref)
            sq_ref[...] = jnp.zeros_like(sq_ref)

        # 1x1 conv: C=3 unrolled scalar*tile FMAs on the VPU (not the MXU).
        v1 = x_ref[:, 0] * w_ref[0]
        for c in range(1, C):
            v1 = v1 + x_ref[:, c] * w_ref[c]
        v1_ref[...] = v1

        if needs_mask:
            # Tail row-block: zero out rows past the true extent before reducing
            # (OOB reads are garbage; OOB v1 stores are masked by Pallas).
            valid_rows = jnp.minimum(rows - j * TR, TR)
            row_id = lax.broadcasted_iota(jnp.int32, v1.shape, 1)
            vm = jnp.where(row_id < valid_rows, v1, 0.0)
        else:
            vm = v1

        flat = vm.reshape(-1, 128)
        if R % 8 == 0:
            part = flat.reshape(R // 8, 8, 128)
            sum_ref[...] += jnp.sum(part, axis=0)
            sq_ref[...] += jnp.sum(part * part, axis=0)
        else:
            # Tiny-tile fallback (< 8 flattened rows): accumulate into row 0.
            sum_ref[0:1, :] += jnp.sum(flat, axis=0, keepdims=True)
            sq_ref[0:1, :] += jnp.sum(flat * flat, axis=0, keepdims=True)

    return kernel


def _bn_hswish_kernel(p_ref, s_ref, sq_ref, v1_ref, o_ref):
    """Pass 2: finish BN stats + v2 = v1*scale + shift; out = v1*relu6(v2+3)/6.

    p_ref  : SMEM (4,) f32  [gamma, beta, 1/count, eps]
    s_ref  : VMEM (n_bb, 8, 128) f32 sum partials (fetched once; constant index)
    sq_ref : VMEM (n_bb, 8, 128) f32 sumsq partials
    v1_ref : VMEM (NB, TR, 128) f32 (aliased with o_ref's HBM buffer)
    o_ref  : VMEM (NB, TR, 128) f32
    """
    gamma, beta, inv_count, eps = p_ref[0], p_ref[1], p_ref[2], p_ref[3]

    total_s = jnp.sum(s_ref[...].reshape(-1, 128))
    total_sq = jnp.sum(sq_ref[...].reshape(-1, 128))
    mean = total_s * inv_count
    var = jnp.maximum(total_sq * inv_count - mean * mean, 0.0)  # biased var
    inv_std = lax.rsqrt(var + eps)
    scale = gamma * inv_std
    shift = beta - mean * scale

    v1 = v1_ref[...]
    v2 = v1 * scale + shift
    v4 = jnp.clip(v2 + 3.0, 0.0, 6.0)          # relu6(v2 + 3)
    o_ref[...] = v1 * v4 * (1.0 / 6.0)


def _pick_tiles(N, rows, max_tile_rows):
    """Pick (NB, TR): rows-per-step TR (capped, multiple of 8 unless full) and
    images-per-step NB (divisor of N) so NB*TR <= cap (bounded VMEM footprint)."""
    cap = max(8, (max_tile_rows // 8) * 8)
    TR = rows if rows <= cap else cap
    NB = 1
    for d in range(1, N + 1):
        if N % d == 0 and d * TR <= cap:
            NB = d
    return NB, TR


def fused_conv_bn_hswish(x_nchw, conv_w, gamma, beta, eps=1e-5, tile_rows=1024):
    """x_nchw: (N, C, H, W) f32; conv_w: (1, C, 1, 1); gamma/beta: (1,)."""
    N, C, H, W = x_nchw.shape
    P = H * W
    assert P % 128 == 0, "H*W must be a multiple of 128 (lane width)"
    # TODO(synk): pad/mask the lane dim for H*W not a multiple of 128.
    rows = P // 128

    NB, TR = _pick_tiles(N, rows, tile_rows)
    n_bb = N // NB
    n_jt = pl.cdiv(rows, TR)
    grid = (n_bb, n_jt)

    # Zero-copy views: no HBM transpose.
    x4 = x_nchw.reshape(N, C, rows, 128).astype(jnp.float32)
    w = conv_w.reshape(C).astype(jnp.float32)

    # ---- Pass 1: conv + per-batch-block sum / sumsq partials ---------------
    v1, s_part, sq_part = pl.pallas_call(
        _make_conv_stats_kernel(C, NB, TR, rows),
        grid=grid,
        in_specs=[
            pl.BlockSpec(memory_space=pltpu.SMEM),                      # w (C,)
            pl.BlockSpec((NB, C, TR, 128), lambda i, j: (i, 0, j, 0)),  # x tile
        ],
        out_specs=[
            pl.BlockSpec((NB, TR, 128), lambda i, j: (i, j, 0)),        # v1 tile
            pl.BlockSpec((None, 8, 128), lambda i, j: (i, 0, 0)),       # sum part
            pl.BlockSpec((None, 8, 128), lambda i, j: (i, 0, 0)),       # sq part
        ],
        out_shape=[
            jax.ShapeDtypeStruct((N, rows, 128), jnp.float32),
            jax.ShapeDtypeStruct((n_bb, 8, 128), jnp.float32),
            jax.ShapeDtypeStruct((n_bb, 8, 128), jnp.float32),
        ],
        compiler_params=pltpu.CompilerParams(
            dimension_semantics=("parallel", "arbitrary")),
    )(w, x4)

    # Tiny constant/param vector (independent of pass-1 results -> no bubble).
    count = N * P
    g = jnp.asarray(gamma, jnp.float32).reshape(())
    b = jnp.asarray(beta, jnp.float32).reshape(())
    params = jnp.stack([g, b, jnp.float32(1.0 / count), jnp.float32(eps)])

    # ---- Pass 2: BN finalize (in-kernel) + normalize + hard-swish tail -----
    out3 = pl.pallas_call(
        _bn_hswish_kernel,
        grid=grid,
        in_specs=[
            pl.BlockSpec(memory_space=pltpu.SMEM),                        # params
            pl.BlockSpec((n_bb, 8, 128), lambda i, j: (0, 0, 0)),         # sum parts
            pl.BlockSpec((n_bb, 8, 128), lambda i, j: (0, 0, 0)),         # sq parts
            pl.BlockSpec((NB, TR, 128), lambda i, j: (i, j, 0)),          # v1 tile
        ],
        out_specs=pl.BlockSpec((NB, TR, 128), lambda i, j: (i, j, 0)),
        out_shape=jax.ShapeDtypeStruct((N, rows, 128), jnp.float32),
        input_output_aliases={3: 0},   # overwrite v1 in place
        compiler_params=pltpu.CompilerParams(
            dimension_semantics=("parallel", "parallel")),
    )(params, s_part, sq_part, v1)

    return out3.reshape(N, 1, H, W)


def _reference(x_nchw, conv_w, gamma, beta, eps=1e-5):
    # Pure-JAX reference matching the PyTorch training-mode forward.
    C = x_nchw.shape[1]
    v1 = jnp.einsum("nchw,oc->nohw", x_nchw, conv_w.reshape(1, C))
    mean = jnp.mean(v1, axis=(0, 2, 3), keepdims=True)
    var = jnp.mean((v1 - mean) ** 2, axis=(0, 2, 3), keepdims=True)
    v2 = (v1 - mean) / jnp.sqrt(var + eps) * gamma.reshape(1, 1, 1, 1) \
        + beta.reshape(1, 1, 1, 1)
    v4 = jnp.clip(v2 + 3.0, 0.0, 6.0)
    return v1 * v4 / 6.0


if __name__ == "__main__":
    key = jax.random.PRNGKey(0)
    kx, kw, kx2, kx3 = jax.random.split(key, 4)

    fused = jax.jit(fused_conv_bn_hswish, static_argnames=("tile_rows",))

    conv_w = jax.random.normal(kw, (1, 3, 1, 1), dtype=jnp.float32) * 0.1
    gamma = jnp.full((1,), 1.3, jnp.float32)
    beta = jnp.full((1,), 0.2, jnp.float32)

    # Test 1: small plane -> rows=2, NB=2 images per step, single grid step.
    x = jax.random.normal(kx, (2, 3, 16, 16), dtype=jnp.float32)
    out = jax.block_until_ready(fused(x, conv_w, gamma, beta))
    ref = _reference(x, conv_w, gamma, beta)
    assert out.shape == (2, 1, 16, 16)
    assert jnp.allclose(out, ref, atol=1e-4, rtol=1e-4), "mismatch (test 1)"

    # Test 2: rows=9 with tile_rows=8 -> cdiv grid with masked tail block,
    # per-batch-block stat partials (n_bb=2), multi-step accumulation.
    x2 = jax.random.normal(kx2, (2, 3, 32, 36), dtype=jnp.float32)
    out2 = jax.block_until_ready(fused(x2, conv_w, gamma, beta, tile_rows=8))
    ref2 = _reference(x2, conv_w, gamma, beta)
    assert out2.shape == (2, 1, 32, 36)
    assert jnp.allclose(out2, ref2, atol=1e-4, rtol=1e-4), "mismatch (test 2)"

    # Test 3: rows=24, tile_rows=8 -> 3 accumulation steps per batch, no mask.
    x3 = jax.random.normal(kx3, (1, 3, 48, 64), dtype=jnp.float32)
    out3 = jax.block_until_ready(fused(x3, conv_w, gamma, beta, tile_rows=8))
    ref3 = _reference(x3, conv_w, gamma, beta)
    assert out3.shape == (1, 1, 48, 64)
    assert jnp.allclose(out3, ref3, atol=1e-4, rtol=1e-4), "mismatch (test 3)"

    print("KERNEL_OK")
</pallas_src>

<mosaic_0001>
module attributes {stable_mosaic.version = 11 : i64} {
  func.func @kernel(%arg0: i32, %arg1: i32, %arg2: memref<3xf32, #tpu.memory_space<smem>>, %arg3: memref<2x3x2x128xf32, #tpu.memory_space<vmem>>, %arg4: memref<2x2x128xf32, #tpu.memory_space<vmem>>, %arg5: memref<1x8x128xf32, #tpu.memory_space<vmem>>, %arg6: memref<1x8x128xf32, #tpu.memory_space<vmem>>) attributes {dimension_semantics = [#tpu.dimension_semantics<parallel>, #tpu.dimension_semantics<arbitrary>], iteration_bounds = array<i64: 1, 1>, scalar_prefetch = 0 : i64, scratch_operands = 0 : i64, tpu.core_type = #tpu.core_type<tc>, window_params = [{transform_indices = @transform_0, window_bounds = array<i64: 3>}, {transform_indices = @transform_1, window_bounds = array<i64: 2, 3, 2, 128>}, {transform_indices = @transform_2, window_bounds = array<i64: 2, 2, 128>}, {transform_indices = @transform_3, window_bounds = array<i64: 1, 8, 128>}, {transform_indices = @transform_4, window_bounds = array<i64: 1, 8, 128>}]} {
    %c0_i32 = arith.constant 0 : i32
    %0 = arith.cmpi eq, %arg1, %c0_i32 : i32
    %1 = arith.extui %0 : i1 to i32
    %c0_i32_0 = arith.constant 0 : i32
    %2 = arith.cmpi ne, %1, %c0_i32_0 : i32
    scf.if %2 {
      %cst_29 = arith.constant 0.000000e+00 : f32
      %39 = vector.broadcast %cst_29 : f32 to vector<8x128xf32>
      %c0_30 = arith.constant 0 : index
      %c0_31 = arith.constant 0 : index
      %c0_32 = arith.constant 0 : index
      %40 = vector.load %arg5[%c0_30, %c0_31, %c0_32] : memref<1x8x128xf32, #tpu.memory_space<vmem>>, vector<1x8x128xf32>
      %41 = vector.shape_cast %40 : vector<1x8x128xf32> to vector<8x128xf32>
      %42 = vector.shape_cast %39 : vector<8x128xf32> to vector<1x8x128xf32>
      tpu.vector_store %arg5[%c0_30, %c0_31, %c0_32], %42 {strides = array<i32>} : memref<1x8x128xf32, #tpu.memory_space<vmem>>, vector<1x8x128xf32>,
      %cst_33 = arith.constant 0.000000e+00 : f32
      %43 = vector.broadcast %cst_33 : f32 to vector<8x128xf32>
      %c0_34 = arith.constant 0 : index
      %c0_35 = arith.constant 0 : index
      %c0_36 = arith.constant 0 : index
      %44 = vector.load %arg6[%c0_34, %c0_35, %c0_36] : memref<1x8x128xf32, #tpu.memory_space<vmem>>, vector<1x8x128xf32>
      %45 = vector.shape_cast %44 : vector<1x8x128xf32> to vector<8x128xf32>
      %46 = vector.shape_cast %43 : vector<8x128xf32> to vector<1x8x128xf32>
      tpu.vector_store %arg6[%c0_34, %c0_35, %c0_36], %46 {strides = array<i32>} : memref<1x8x128xf32, #tpu.memory_space<vmem>>, vector<1x8x128xf32>,
    } else {
    }
    %c0 = arith.constant 0 : index
    %c0_1 = arith.constant 0 : index
    %c0_2 = arith.constant 0 : index
    %c0_3 = arith.constant 0 : index
    %3 = vector.load %arg3[%c0, %c0_1, %c0_2, %c0_3] : memref<2x3x2x128xf32, #tpu.memory_space<vmem>>, vector<2x1x2x128xf32>
    %4 = vector.shape_cast %3 : vector<2x1x2x128xf32> to vector<2x2x128xf32>
    %c0_4 = arith.constant 0 : index
    %5 = memref.load %arg2[%c0_4] : memref<3xf32, #tpu.memory_space<smem>>
    %6 = vector.broadcast %5 : f32 to vector<2x2x128xf32>
    %7 = arith.mulf %4, %6 : vector<2x2x128xf32>
    %c0_5 = arith.constant 0 : index
    %c1 = arith.constant 1 : index
    %c0_6 = arith.constant 0 : index
    %c0_7 = arith.constant 0 : index
    %8 = vector.load %arg3[%c0_5, %c1, %c0_6, %c0_7] : memref<2x3x2x128xf32, #tpu.memory_space<vmem>>, vector<2x1x2x128xf32>
    %9 = vector.shape_cast %8 : vector<2x1x2x128xf32> to vector<2x2x128xf32>
    %c1_8 = arith.constant 1 : index
    %10 = memref.load %arg2[%c1_8] : memref<3xf32, #tpu.memory_space<smem>>
    %11 = vector.broadcast %10 : f32 to vector<2x2x128xf32>
    %12 = arith.mulf %9, %11 : vector<2x2x128xf32>
    %13 = arith.addf %7, %12 : vector<2x2x128xf32>
    %c0_9 = arith.constant 0 : index
    %c2 = arith.constant 2 : index
    %c0_10 = arith.constant 0 : index
    %c0_11 = arith.constant 0 : index
    %14 = vector.load %arg3[%c0_9, %c2, %c0_10, %c0_11] : memref<2x3x2x128xf32, #tpu.memory_space<vmem>>, vector<2x1x2x128xf32>
    %15 = vector.shape_cast %14 : vector<2x1x2x128xf32> to vector<2x2x128xf32>
    %c2_12 = arith.constant 2 : index
    %16 = memref.load %arg2[%c2_12] : memref<3xf32, #tpu.memory_space<smem>>
    %17 = vector.broadcast %16 : f32 to vector<2x2x128xf32>
    %18 = arith.mulf %15, %17 : vector<2x2x128xf32>
    %19 = arith.addf %13, %18 : vector<2x2x128xf32>
    %c0_13 = arith.constant 0 : index
    %c0_14 = arith.constant 0 : index
    %c0_15 = arith.constant 0 : index
    %20 = vector.load %arg4[%c0_13, %c0_14, %c0_15] : memref<2x2x128xf32, #tpu.memory_space<vmem>>, vector<2x2x128xf32>
    tpu.vector_store %arg4[%c0_13, %c0_14, %c0_15], %19 {strides = array<i32>} : memref<2x2x128xf32, #tpu.memory_space<vmem>>, vector<2x2x128xf32>,
    %21 = vector.shape_cast %19 : vector<2x2x128xf32> to vector<4x128xf32>
    %c0_16 = arith.constant 0 : index
    %c0_17 = arith.constant 0 : index
    %c0_18 = arith.constant 0 : index
    %22 = vector.load %arg5[%c0_16, %c0_17, %c0_18] : memref<1x8x128xf32, #tpu.memory_space<vmem>>, vector<1x1x128xf32>
    %23 = vector.shape_cast %22 : vector<1x1x128xf32> to vector<1x128xf32>
    %cst = arith.constant dense<0.000000e+00> : vector<128xf32>
    %24 = vector.multi_reduction <add>, %21, %cst [0] : vector<4x128xf32> to vector<128xf32>
    %25 = vector.shape_cast %24 : vector<128xf32> to vector<1x128xf32>
    %26 = arith.addf %23, %25 : vector<1x128xf32>
    %c0_19 = arith.constant 0 : index
    %c0_20 = arith.constant 0 : index
    %c0_21 = arith.constant 0 : index
    %27 = vector.load %arg5[%c0_19, %c0_20, %c0_21] : memref<1x8x128xf32, #tpu.memory_space<vmem>>, vector<1x1x128xf32>
    %28 = vector.shape_cast %27 : vector<1x1x128xf32> to vector<1x128xf32>
    %29 = vector.shape_cast %26 : vector<1x128xf32> to vector<1x1x128xf32>
    tpu.vector_store %arg5[%c0_19, %c0_20, %c0_21], %29 {strides = array<i32>} : memref<1x8x128xf32, #tpu.memory_space<vmem>>, vector<1x1x128xf32>,
    %c0_22 = arith.constant 0 : index
    %c0_23 = arith.constant 0 : index
    %c0_24 = arith.constant 0 : index
    %30 = vector.load %arg6[%c0_22, %c0_23, %c0_24] : memref<1x8x128xf32, #tpu.memory_space<vmem>>, vector<1x1x128xf32>
    %31 = vector.shape_cast %30 : vector<1x1x128xf32> to vector<1x128xf32>
    %32 = arith.mulf %21, %21 : vector<4x128xf32>
    %cst_25 = arith.constant dense<0.000000e+00> : vector<128xf32>
    %33 = vector.multi_reduction <add>, %32, %cst_25 [0] : vector<4x128xf32> to vector<128xf32>
    %34 = vector.shape_cast %33 : vector<128xf32> to vector<1x128xf32>
    %35 = arith.addf %31, %34 : vector<1x128xf32>
    %c0_26 = arith.constant 0 : index
    %c0_27 = arith.constant 0 : index
    %c0_28 = arith.constant 0 : index
    %36 = vector.load %arg6[%c0_26, %c0_27, %c0_28] : memref<1x8x128xf32, #tpu.memory_space<vmem>>, vector<1x1x128xf32>
    %37 = vector.shape_cast %36 : vector<1x1x128xf32> to vector<1x128xf32>
    %38 = vector.shape_cast %35 : vector<1x128xf32> to vector<1x1x128xf32>
    tpu.vector_store %arg6[%c0_26, %c0_27, %c0_28], %38 {strides = array<i32>} : memref<1x8x128xf32, #tpu.memory_space<vmem>>, vector<1x1x128xf32>,
    return
  }
  func.func @transform_0(%arg0: i32, %arg1: i32) -> i32 {
    %c0_i32 = arith.constant 0 : i32
    %c0_i32_0 = arith.constant 0 : i32
    return %c0_i32 : i32
  }
  func.func @transform_1(%arg0: i32, %arg1: i32) -> (i32, i32, i32, i32) {
    %c0_i32 = arith.constant 0 : i32
    %c0_i32_0 = arith.constant 0 : i32
    %c0_i32_1 = arith.constant 0 : i32
    return %arg0, %c0_i32, %arg1, %c0_i32_0 : i32, i32, i32, i32
  }
  func.func @transform_2(%arg0: i32, %arg1: i32) -> (i32, i32, i32) {
    %c0_i32 = arith.constant 0 : i32
    %c0_i32_0 = arith.constant 0 : i32
    return %arg0, %arg1, %c0_i32 : i32, i32, i32
  }
  func.func @transform_3(%arg0: i32, %arg1: i32) -> (i32, i32, i32) {
    %c0_i32 = arith.constant 0 : i32
    %c0_i32_0 = arith.constant 0 : i32
    %c0_i32_1 = arith.constant 0 : i32
    return %arg0, %c0_i32, %c0_i32_0 : i32, i32, i32
  }
  func.func @transform_4(%arg0: i32, %arg1: i32) -> (i32, i32, i32) {
    %c0_i32 = arith.constant 0 : i32
    %c0_i32_0 = arith.constant 0 : i32
    %c0_i32_1 = arith.constant 0 : i32
    return %arg0, %c0_i32, %c0_i32_0 : i32, i32, i32
  }
}

module attributes {stable_mosaic.version = 11 : i64} {
  func.func @_bn_hswish_kernel(%arg0: i32, %arg1: i32, %arg2: memref<4xf32, #tpu.memory_space<smem>>, %arg3: memref<1x8x128xf32, #tpu.memory_space<vmem>>, %arg4: memref<1x8x128xf32, #tpu.memory_space<vmem>>, %arg5: memref<2x2x128xf32, #tpu.memory_space<vmem>>, %arg6: memref<2x2x128xf32, #tpu.memory_space<vmem>>) attributes {dimension_semantics = [#tpu.dimension_semantics<parallel>, #tpu.dimension_semantics<parallel>], iteration_bounds = array<i64: 1, 1>, scalar_prefetch = 0 : i64, scratch_operands = 0 : i64, tpu.core_type = #tpu.core_type<tc>, window_params = [{transform_indices = @transform_0, window_bounds = array<i64: 4>}, {pipeline_mode = #tpu.pipeline_mode<synchronous>, transform_indices = @transform_1, window_bounds = array<i64: 1, 8, 128>}, {pipeline_mode = #tpu.pipeline_mode<synchronous>, transform_indices = @transform_2, window_bounds = array<i64: 1, 8, 128>}, {transform_indices = @transform_3, window_bounds = array<i64: 2, 2, 128>}, {transform_indices = @transform_4, window_bounds = array<i64: 2, 2, 128>}]} {
    %c0 = arith.constant 0 : index
    %0 = memref.load %arg2[%c0] : memref<4xf32, #tpu.memory_space<smem>>
    %c1 = arith.constant 1 : index
    %1 = memref.load %arg2[%c1] : memref<4xf32, #tpu.memory_space<smem>>
    %c2 = arith.constant 2 : index
    %2 = memref.load %arg2[%c2] : memref<4xf32, #tpu.memory_space<smem>>
    %c3 = arith.constant 3 : index
    %3 = memref.load %arg2[%c3] : memref<4xf32, #tpu.memory_space<smem>>
    %c0_0 = arith.constant 0 : index
    %c0_1 = arith.constant 0 : index
    %c0_2 = arith.constant 0 : index
    %4 = vector.load %arg3[%c0_0, %c0_1, %c0_2] : memref<1x8x128xf32, #tpu.memory_space<vmem>>, vector<1x8x128xf32>
    %5 = vector.shape_cast %4 : vector<1x8x128xf32> to vector<8x128xf32>
    %6 = vector.shape_cast %5 : vector<8x128xf32> to vector<1x8x128xf32>
    %cst = arith.constant dense<0.000000e+00> : vector<1xf32>
    %7 = vector.multi_reduction <add>, %6, %cst [1, 2] : vector<1x8x128xf32> to vector<1xf32>
    %8 = vector.shape_cast %7 : vector<1xf32> to vector<1x1x1xf32>
    %9 = vector.extract %8[0, 0, 0] : f32 from vector<1x1x1xf32>
    %c0_3 = arith.constant 0 : index
    %c0_4 = arith.constant 0 : index
    %c0_5 = arith.constant 0 : index
    %10 = vector.load %arg4[%c0_3, %c0_4, %c0_5] : memref<1x8x128xf32, #tpu.memory_space<vmem>>, vector<1x8x128xf32>
    %11 = vector.shape_cast %10 : vector<1x8x128xf32> to vector<8x128xf32>
    %12 = vector.shape_cast %11 : vector<8x128xf32> to vector<1x8x128xf32>
    %cst_6 = arith.constant dense<0.000000e+00> : vector<1xf32>
    %13 = vector.multi_reduction <add>, %12, %cst_6 [1, 2] : vector<1x8x128xf32> to vector<1xf32>
    %14 = vector.shape_cast %13 : vector<1xf32> to vector<1x1x1xf32>
    %15 = vector.extract %14[0, 0, 0] : f32 from vector<1x1x1xf32>
    %16 = arith.mulf %9, %2 : f32
    %17 = arith.mulf %15, %2 : f32
    %18 = arith.mulf %16, %16 : f32
    %19 = arith.subf %17, %18 : f32
    %cst_7 = arith.constant 0.000000e+00 : f32
    %20 = arith.maximumf %19, %cst_7 : f32
    %21 = arith.addf %20, %3 : f32
    %22 = math.rsqrt %21 : f32
    %23 = arith.mulf %0, %22 : f32
    %24 = arith.mulf %16, %23 : f32
    %25 = arith.subf %1, %24 : f32
    %c0_8 = arith.constant 0 : index
    %c0_9 = arith.constant 0 : index
    %c0_10 = arith.constant 0 : index
    %26 = vector.load %arg5[%c0_8, %c0_9, %c0_10] : memref<2x2x128xf32, #tpu.memory_space<vmem>>, vector<2x2x128xf32>
    %27 = vector.broadcast %23 : f32 to vector<2x2x128xf32>
    %28 = arith.mulf %26, %27 : vector<2x2x128xf32>
    %29 = vector.broadcast %25 : f32 to vector<2x2x128xf32>
    %30 = arith.addf %28, %29 : vector<2x2x128xf32>
    %cst_11 = arith.constant 3.000000e+00 : f32
    %31 = vector.broadcast %cst_11 : f32 to vector<2x2x128xf32>
    %32 = arith.addf %30, %31 : vector<2x2x128xf32>
    %cst_12 = arith.constant 0.000000e+00 : f32
    %cst_13 = arith.constant 6.000000e+00 : f32
    %33 = vector.broadcast %cst_12 : f32 to vector<2x2x128xf32>
    %34 = arith.maximumf %33, %32 : vector<2x2x128xf32>
    %35 = vector.broadcast %cst_13 : f32 to vector<2x2x128xf32>
    %36 = arith.minimumf %35, %34 : vector<2x2x128xf32>
    %37 = arith.mulf %26, %36 : vector<2x2x128xf32>
    %cst_14 = arith.constant 0.166666672 : f32
    %38 = vector.broadcast %cst_14 : f32 to vector<2x2x128xf32>
    %39 = arith.mulf %37, %38 : vector<2x2x128xf32>
    %c0_15 = arith.constant 0 : index
    %c0_16 = arith.constant 0 : index
    %c0_17 = arith.constant 0 : index
    %40 = vector.load %arg6[%c0_15, %c0_16, %c0_17] : memref<2x2x128xf32, #tpu.memory_space<vmem>>, vector<2x2x128xf32>
    tpu.vector_store %arg6[%c0_15, %c0_16, %c0_17], %39 {strides = array<i32>} : memref<2x2x128xf32, #tpu.memory_space<vmem>>, vector<2x2x128xf32>,
    return
  }
  func.func @transform_0(%arg0: i32, %arg1: i32) -> i32 {
    %c0_i32 = arith.constant 0 : i32
    %c0_i32_0 = arith.constant 0 : i32
    return %c0_i32 : i32
  }
  func.func @transform_1(%arg0: i32, %arg1: i32) -> (i32, i32, i32) {
    %c0_i32 = arith.constant 0 : i32
    %c0_i32_0 = arith.constant 0 : i32
    %c0_i32_1 = arith.constant 0 : i32
    %c0_i32_2 = arith.constant 0 : i32
    return %c0_i32, %c0_i32_0, %c0_i32_1 : i32, i32, i32
  }
  func.func @transform_2(%arg0: i32, %arg1: i32) -> (i32, i32, i32) {
    %c0_i32 = arith.constant 0 : i32
    %c0_i32_0 = arith.constant 0 : i32
    %c0_i32_1 = arith.constant 0 : i32
    %c0_i32_2 = arith.constant 0 : i32
    return %c0_i32, %c0_i32_0, %c0_i32_1 : i32, i32, i32
  }
  func.func @transform_3(%arg0: i32, %arg1: i32) -> (i32, i32, i32) {
    %c0_i32 = arith.constant 0 : i32
    %c0_i32_0 = arith.constant 0 : i32
    return %arg0, %arg1, %c0_i32 : i32, i32, i32
  }
  func.func @transform_4(%arg0: i32, %arg1: i32) -> (i32, i32, i32) {
    %c0_i32 = arith.constant 0 : i32
    %c0_i32_0 = arith.constant 0 : i32
    return %arg0, %arg1, %c0_i32 : i32, i32, i32
  }
}

</mosaic_0001>

<llo_original>
// kernel: fused_conv_bn_hswish.2
$region0: #{fused_conv_bn_hswish.2}
  #allocation0 [shape = 'u32[]', space=smem, size = 0x4, offset = 0x4, fixed_abs, tag = 'smem constant byte address 0x4 - core index']
  #allocation1 [shape = 'u32[72,128]{1,0:T(1,128)}', space=vmem, size = 0x9000, scoped, tag = 'internal scratch']
  %s0 = inlined_call_operand.vmem [shape: f32[3], index: 0, kind: input, shape index: {}]
  %s1 = inlined_call_operand.vmem [shape: f32[2,3,2,128], index: 1, kind: input, shape index: {}]
  %s2 = inlined_call_operand.vmem [shape: f32[2,2,128], index: 2, kind: output, shape index: {0}]
  %s3 = inlined_call_operand.vmem [shape: f32[1,8,128], index: 3, kind: output, shape index: {1}]
  %s4 = inlined_call_operand.vmem [shape: f32[1,8,128], index: 4, kind: output, shape index: {2}]
  %5 = xla_tuple %s2, %s3, %s4
  %s6 = sld [smem:[#allocation0]]
  $region42: #{fused_conv_bn_hswish.2} parent=0
    _
  %s8 = ssub.s32 1, %s6
  %s9 = scalar_select 0, %s8, %s6
  $region1: #{fused_conv_bn_hswish.2} parent=0
    #allocation2 [shape = 'u8[512]{0}', space=smem, size = 0x200, scoped, tag = 'input window, operand 0, single buffered']
    #allocation3 [shape = 's32[1]{0}', space=sflag, size = 0x4, scoped, tag = 'scoped memory for fused_conv_bn_hswish.2']
    %10 = vsyncpa [#allocation3], 0
    // Predicated region
    $region2: #{fused_conv_bn_hswish.2} parent=1 // pred_check
      _
    $region3: #{fused_conv_bn_hswish.2} parent=1 // pred_check_branch
      %12 = sbr.rel (0) target = $region5
    $region4: #{fused_conv_bn_hswish.2} parent=1 // pred_region
      %14 = vsyncadd [#allocation3], 0
      %s16 = sshll.u32 %s0, 4
      %s17 = int_to_ptr.vmem [resolvable:$true] %s16
      %19 = dma.vmem_to_smem %s17, 16, [#allocation2], [#allocation3]
    $region5: #{fused_conv_bn_hswish.2} parent=1 // pred_fallthru
      _
    // Predicated region
    $region6: #{fused_conv_bn_hswish.2} parent=1 // pred_check
      _
    $region7: #{fused_conv_bn_hswish.2} parent=1 // pred_check_branch
      %21 = sbr.rel (0) target = $region9
    $region8: #{fused_conv_bn_hswish.2} parent=1 // pred_region
      _
    $region9: #{fused_conv_bn_hswish.2} parent=1 // pred_fallthru
      _
    // Predicated region
    $region10: #{fused_conv_bn_hswish.2} parent=1 // pred_check
      _
    $region11: #{fused_conv_bn_hswish.2} parent=1 // pred_check_branch
      %23 = sbr.rel (0) target = $region13
    $region12: #{fused_conv_bn_hswish.2} parent=1 // pred_region
      %25 = dma.done [#allocation3], 16
    $region13: #{fused_conv_bn_hswish.2} parent=1 // pred_fallthru
      _
    %26 = sfence
    %p27 = scmp.eq.s32.totalorder 0, 0
    // Predicated region
    $region14: #{fused_conv_bn_hswish.2} parent=1 // pred_check
      %p28 = pneg %p27
    $region15: #{fused_conv_bn_hswish.2} parent=1 // pred_check_branch
      %30 = sbr.rel (%p28) target = $region17
    $region16: #{fused_conv_bn_hswish.2} parent=1 // pred_region
      %31 = vst [vmem:[%s3] sm:$0xff] 0.0
      %32 = vst [vmem:[%s4] sm:$0xff] 0.0
    $region17: #{fused_conv_bn_hswish.2} parent=1 // pred_fallthru
      _
    %v33 = vld [vmem:[%s1] sm:$0x3]
    %v34 = vld [vmem:[%s1 + $0x6] sm:$0x3]
    %s35 = sld [smem:[#allocation2]]
    %v36 = vstv %s35
    %v37 = vmul.f32 %v33, %v36
    %v38 = vmul.f32 %v34, %v36
    %s39 = scalar_lea.vmem %s1, 2
    %v40 = vld [vmem:[%s39] sm:$0x3]
    %v41 = vld [vmem:[%s39 + $0x6] sm:$0x3]
    %s42 = sld [smem:[#allocation2 + $0x1]]
    %v43 = vstv %s42
    %v44 = vmul.f32 %v40, %v43
    %v45 = vmul.f32 %v41, %v43
    %v46 = vadd.f32 %v37, %v44
    %v47 = vadd.f32 %v38, %v45
    %s48 = scalar_lea.vmem %s1, 4
    %v49 = vld [vmem:[%s48] sm:$0x3]
    %v50 = vld [vmem:[%s48 + $0x6] sm:$0x3]
    %s51 = sld [smem:[#allocation2 + $0x2]]
    %v52 = vstv %s51
    %v53 = vmul.f32 %v49, %v52
    %v54 = vmul.f32 %v50, %v52
    %v55 = vadd.f32 %v46, %v53
    %v56 = vadd.f32 %v47, %v54
    %57 = vst [vmem:[%s2] sm:$0x3] %v55
    %58 = vst [vmem:[%s2 + $0x2] sm:$0x3] %v56
    %v59 = vld [vmem:[%s3] sm:$0x1]
    %62 = vst [vmem:[#allocation1] ss:$4 sm:$0xff] %v55
    %s63 = scalar_lea.vmem [#allocation1], 1
    %64 = vst [vmem:[%s63] ss:$4 sm:$0xff] %v56
    %v65 = vld.sshfl [vmem:[#allocation1] sm:$0xff pattern:$0x73625140]
    %vm67 = vcmask 1043456
    %v68 = vsel %vm67, %v65, 0.0
    %v69 = vrot.slane %v68, 4
    %v70 = vadd.f32 %v68, %v69
    %v71 = vrot.slane %v70, 2
    %v72 = vadd.f32 %v70, %v71
    %v73 = vrot.slane %v72, 1
    %v74 = vadd.f32 %v72, %v73
    %v75 = vadd.f32 %v59, %v74
    %76 = vst [vmem:[%s3] sm:$0x1] %v75
    %v77 = vld [vmem:[%s4] sm:$0x1]
    %v78 = vmul.f32 %v55, %v55
    %v79 = vmul.f32 %v56, %v56
    %82 = vst [vmem:[#allocation1] ss:$4 sm:$0xff] %v78
    %s83 = scalar_lea.vmem [#allocation1], 1
    %84 = vst [vmem:[%s83] ss:$4 sm:$0xff] %v79
    %v85 = vld.sshfl [vmem:[#allocation1] sm:$0xff pattern:$0x73625140]
    %v87 = vsel %vm67, %v85, 0.0
    %v88 = vrot.slane %v87, 4
    %v89 = vadd.f32 %v87, %v88
    %v90 = vrot.slane %v89, 2
    %v91 = vadd.f32 %v89, %v90
    %v92 = vrot.slane %v91, 1
    %v93 = vadd.f32 %v91, %v92
    %v94 = vadd.f32 %v77, %v93
    %95 = vst [vmem:[%s4] sm:$0x1] %v94
    // Predicated region
    $region18: #{fused_conv_bn_hswish.2} parent=1 // pred_check
      _
    $region19: #{fused_conv_bn_hswish.2} parent=1 // pred_check_branch
      %97 = sbr.rel (0) target = $region21
    $region20: #{fused_conv_bn_hswish.2} parent=1 // pred_region
      _
    $region21: #{fused_conv_bn_hswish.2} parent=1 // pred_fallthru
      _
    // Predicated region
    $region22: #{fused_conv_bn_hswish.2} parent=1 // pred_check
      _
    $region23: #{fused_conv_bn_hswish.2} parent=1 // pred_check_branch
      %99 = sbr.rel (0) target = $region25
    $region24: #{fused_conv_bn_hswish.2} parent=1 // pred_region
      _
    $region25: #{fused_conv_bn_hswish.2} parent=1 // pred_fallthru
      _
    // Predicated region
    $region26: #{fused_conv_bn_hswish.2} parent=1 // pred_check
      _
    $region27: #{fused_conv_bn_hswish.2} parent=1 // pred_check_branch
      %101 = sbr.rel (0) target = $region29
    $region28: #{fused_conv_bn_hswish.2} parent=1 // pred_region
      _
    $region29: #{fused_conv_bn_hswish.2} parent=1 // pred_fallthru
      _
    // Predicated region
    $region30: #{fused_conv_bn_hswish.2} parent=1 // pred_check
      _
    $region31: #{fused_conv_bn_hswish.2} parent=1 // pred_check_branch
      %103 = sbr.rel (0) target = $region33
    $region32: #{fused_conv_bn_hswish.2} parent=1 // pred_region
      _
    $region33: #{fused_conv_bn_hswish.2} parent=1 // pred_fallthru
      _
    // Predicated region
    $region34: #{fused_conv_bn_hswish.2} parent=1 // pred_check
      _
    $region35: #{fused_conv_bn_hswish.2} parent=1 // pred_check_branch
      %105 = sbr.rel (0) target = $region37
    $region36: #{fused_conv_bn_hswish.2} parent=1 // pred_region
      _
    $region37: #{fused_conv_bn_hswish.2} parent=1 // pred_fallthru
      _
    // Predicated region
    $region38: #{fused_conv_bn_hswish.2} parent=1 // pred_check
      _
    $region39: #{fused_conv_bn_hswish.2} parent=1 // pred_check_branch
      %107 = sbr.rel (0) target = $region41
    $region40: #{fused_conv_bn_hswish.2} parent=1 // pred_region
      _
    $region41: #{fused_conv_bn_hswish.2} parent=1 // pred_fallthru
      _
    %108 = vsyncpa [#allocation3], 1

// kernel: fused_conv_bn_hswish.3
$region0: #{fused_conv_bn_hswish.3}
  #allocation0 [shape = 'u32[]', space=smem, size = 0x4, offset = 0x4, fixed_abs, tag = 'smem constant byte address 0x4 - core index']
  #allocation1 [shape = 'u32[72,128]{1,0:T(1,128)}', space=vmem, size = 0x9000, scoped, tag = 'internal scratch']
  %s0 = inlined_call_operand.vmem [shape: f32[4], index: 0, kind: input, shape index: {}]
  %s1 = inlined_call_operand.vmem [shape: f32[1,8,128], index: 1, kind: input, shape index: {}]
  %s2 = inlined_call_operand.vmem [shape: f32[1,8,128], index: 2, kind: input, shape index: {}]
  %s3 = inlined_call_operand.vmem [shape: f32[2,2,128], index: 3, kind: input, shape index: {}, may-alias: {3,4}]
  %s4 = inlined_call_operand.vmem [shape: f32[2,2,128], index: 4, kind: output, shape index: {}, may-alias: {3,4}]
  %s5 = sld [smem:[#allocation0]]
  $region30: #{fused_conv_bn_hswish.3} parent=0
    _
  %s7 = ssub.s32 1, %s5
  %s8 = scalar_select 0, %s7, %s5
  $region1: #{fused_conv_bn_hswish.3} parent=0
    #allocation2 [shape = 'u8[512]{0}', space=smem, size = 0x200, scoped, tag = 'input window, operand 0, single buffered']
    #allocation3 [shape = 's32[1]{0}', space=sflag, size = 0x4, scoped, tag = 'scoped memory for fused_conv_bn_hswish.3']
    %9 = vsyncpa [#allocation3], 0
    // Predicated region
    $region2: #{fused_conv_bn_hswish.3} parent=1 // pred_check
      _
    $region3: #{fused_conv_bn_hswish.3} parent=1 // pred_check_branch
      %11 = sbr.rel (0) target = $region5
    $region4: #{fused_conv_bn_hswish.3} parent=1 // pred_region
      %13 = vsyncadd [#allocation3], 0
      %s15 = sshll.u32 %s0, 4
      %s16 = int_to_ptr.vmem [resolvable:$true] %s15
      %18 = dma.vmem_to_smem %s16, 16, [#allocation2], [#allocation3]
    $region5: #{fused_conv_bn_hswish.3} parent=1 // pred_fallthru
      _
    // Predicated region
    $region6: #{fused_conv_bn_hswish.3} parent=1 // pred_check
      _
    $region7: #{fused_conv_bn_hswish.3} parent=1 // pred_check_branch
      %20 = sbr.rel (0) target = $region9
    $region8: #{fused_conv_bn_hswish.3} parent=1 // pred_region
      _
    $region9: #{fused_conv_bn_hswish.3} parent=1 // pred_fallthru
      _
    // Predicated region
    $region10: #{fused_conv_bn_hswish.3} parent=1 // pred_check
      _
    $region11: #{fused_conv_bn_hswish.3} parent=1 // pred_check_branch
      %22 = sbr.rel (0) target = $region13
    $region12: #{fused_conv_bn_hswish.3} parent=1 // pred_region
      _
    $region13: #{fused_conv_bn_hswish.3} parent=1 // pred_fallthru
      _
    // Predicated region
    $region14: #{fused_conv_bn_hswish.3} parent=1 // pred_check
      _
    $region15: #{fused_conv_bn_hswish.3} parent=1 // pred_check_branch
      %24 = sbr.rel (0) target = $region17
    $region16: #{fused_conv_bn_hswish.3} parent=1 // pred_region
      _
    $region17: #{fused_conv_bn_hswish.3} parent=1 // pred_fallthru
      _
    // Predicated region
    $region18: #{fused_conv_bn_hswish.3} parent=1 // pred_check
      _
    $region19: #{fused_conv_bn_hswish.3} parent=1 // pred_check_branch
      %26 = sbr.rel (0) target = $region21
    $region20: #{fused_conv_bn_hswish.3} parent=1 // pred_region
      %28 = dma.done [#allocation3], 16
    $region21: #{fused_conv_bn_hswish.3} parent=1 // pred_fallthru
      _
    %29 = sfence
    %s30 = sld [smem:[#allocation2]]
    %s31 = sld [smem:[#allocation2 + $0x1]]
    %s32 = sld [smem:[#allocation2 + $0x2]]
    %s33 = sld [smem:[#allocation2 + $0x3]]
    %v34 = vld [vmem:[%s1] sm:$0xff]
    %35 = vadd.xlane.f32.xlu0 %v34
    %v36 = vpop.xlane.xlu0 %35
    %v37 = vrot.slane %v36, 4
    %v38 = vadd.f32 %v36, %v37
    %v39 = vrot.slane %v38, 2
    %v40 = vadd.f32 %v38, %v39
    %v41 = vrot.slane %v40, 1
    %v42 = vadd.f32 %v40, %v41
    %s43 = vtos %v42
    %v44 = vld [vmem:[%s2] sm:$0xff]
    %45 = vadd.xlane.f32.xlu0 %v44
    %v46 = vpop.xlane.xlu0 %45
    %v47 = vrot.slane %v46, 4
    %v48 = vadd.f32 %v46, %v47
    %v49 = vrot.slane %v48, 2
    %v50 = vadd.f32 %v48, %v49
    %v51 = vrot.slane %v50, 1
    %v52 = vadd.f32 %v50, %v51
    %s53 = vtos %v52
    %s54 = smul.f32 %s43, %s32
    %s55 = smul.f32 %s53, %s32
    %s56 = smul.f32 %s54, %s54
    %s57 = ssub.f32 %s55, %s56
    %s58 = smax.f32 %s57, 0.0
    %s59 = sadd.f32 %s58, %s33
    %v60 = vstv %s59
    %v61 = vrsqrt.pop %v60
    %v62 = vmul.f32 %v61, %v60
    %v63 = vmul.f32 %v62, %v61
    %v64 = vmul.f32 0.5, %v63
    %v65 = vsub.f32 1.5, %v64
    %v66 = vmul.f32 %v61, %v65
    %vm67 = vweird.f32 %v60
    %vm68 = vweird.f32 %v61
    %vm69 = vmor %vm67, %vm68
    %v70 = vsel %vm69, %v61, %v66
    %s71 = vtos %v70
    %s72 = smul.f32 %s30, %s71
    %s73 = smul.f32 %s54, %s72
    %s74 = ssub.f32 %s31, %s73
    %v75 = vld [vmem:[%s3] sm:$0x3]
    %v76 = vld [vmem:[%s3 + $0x2] sm:$0x3]
    %v77 = vstv %s72
    %v78 = vmul.f32 %v75, %v77
    %v79 = vmul.f32 %v76, %v77
    %v80 = vstv %s74
    %v81 = vadd.f32 %v78, %v80
    %v82 = vadd.f32 %v79, %v80
    %v83 = vadd.f32 %v81, 3.0
    %v84 = vadd.f32 %v82, 3.0
    %v85 = vmax.f32 %v83, 0.0
    %v86 = vmax.f32 %v84, 0.0
    %v87 = vmin.f32 %v85, 6.0
    %v88 = vmin.f32 %v86, 6.0
    %v89 = vmul.f32 %v75, %v87
    %v90 = vmul.f32 %v76, %v88
    %v91 = vmul.f32 %v89, 0.16666667
    %v92 = vmul.f32 %v90, 0.16666667
    %93 = vst [vmem:[%s4] sm:$0x3] %v91
    %94 = vst [vmem:[%s4 + $0x2] sm:$0x3] %v92
    // Predicated region
    $region22: #{fused_conv_bn_hswish.3} parent=1 // pred_check
      _
    $region23: #{fused_conv_bn_hswish.3} parent=1 // pred_check_branch
      %96 = sbr.rel (0) target = $region25
    $region24: #{fused_conv_bn_hswish.3} parent=1 // pred_region
      _
    $region25: #{fused_conv_bn_hswish.3} parent=1 // pred_fallthru
      _
    // Predicated region
    $region26: #{fused_conv_bn_hswish.3} parent=1 // pred_check
      _
    $region27: #{fused_conv_bn_hswish.3} parent=1 // pred_check_branch
      %98 = sbr.rel (0) target = $region29
    $region28: #{fused_conv_bn_hswish.3} parent=1 // pred_region
      _
    $region29: #{fused_conv_bn_hswish.3} parent=1 // pred_fallthru
      _
    %99 = vsyncpa [#allocation3], 1

</llo_original>
